<compile_context>
chip_gen: v6e
topology: v6e:2x2x1
jax: 0.10.0
libtpu: 0.0.40
codegen_flags: <defaults>
</compile_context>

<pallas_src>
import functools
import math

import jax
import jax.numpy as jnp
import numpy as np
from jax.experimental import pallas as pl
from jax.experimental.pallas import tpu as pltpu


# ---------------------------------------------------------------------------
# PE table (the PyTorch register_buffer), cached per (S, d_model, dtype).
# ---------------------------------------------------------------------------
@functools.lru_cache(maxsize=32)
def _pe_table(S: int, d_model: int, dtype_name: str) -> jax.Array:
    position = np.arange(S, dtype=np.float32)[:, None]
    div_term = np.exp(np.arange(0, d_model, 2, dtype=np.float32)
                      * (-math.log(10000.0) / d_model))
    angles = position * div_term                          # (S, d_model//2)
    pe = np.zeros((S, d_model), dtype=np.float32)
    pe[:, 0::2] = np.sin(angles)
    pe[:, 1::2] = np.cos(angles)
    return jnp.asarray(pe, dtype=dtype_name)


# ---------------------------------------------------------------------------
# Kernel
# ---------------------------------------------------------------------------
def _make_concat_kernel(Dx: int, d_model: int):
    # Lane-dense fast path only when BOTH halves of the output are 128-lane
    # aligned; otherwise a single fused concat store beats two masked stores.
    lane_aligned = (Dx % 128 == 0) and (d_model % 128 == 0)

    def kernel(x_ref, pe_ref, o_ref):
        # x_ref:  (TB, TS, Dx)
        # pe_ref: (TS, d_model)  -- precomputed table tile (shared across batch)
        # o_ref:  (TB, TS, Dx + d_model)
        x = x_ref[...]
        pe = pe_ref[...][None]                                 # (1, TS, d_model)
        pe = jnp.broadcast_to(pe, (x.shape[0],) + pe.shape[1:])
        if lane_aligned:
            # Two unmasked full-lane stores; no concatenated temporary.
            o_ref[:, :, :Dx] = x
            o_ref[:, :, Dx:] = pe
        else:
            o_ref[...] = jnp.concatenate([x, pe], axis=-1)
        # dropout(p=0.0) is the identity -> nothing to do.

    return kernel


# ---------------------------------------------------------------------------
# Tiling helpers
# ---------------------------------------------------------------------------
def _vmem_budget_and_limit():
    """Per-generation soft VMEM budget for tiles, plus the vmem_limit_bytes
    we pass to the compiler (budget + headroom, well under physical VMEM)."""
    vmem_phys = 64 * 1024 * 1024            # conservative default (v7x per-TC)
    try:
        info = pltpu.get_tpu_info()
        vmem_phys = int(getattr(info, "vmem_capacity_bytes", vmem_phys))
    except Exception:
        pass
    budget = min(28 * 1024 * 1024, int(vmem_phys * 0.45))
    limit = int(min(vmem_phys * 0.75, budget + 8 * 1024 * 1024))
    return budget, limit


def _sublane_multiple(itemsize: int) -> int:
    # (8,128) tiles for 4-byte, (16,128) for 2-byte, (32,128) for 1-byte dtypes.
    return max(8, 32 // max(1, itemsize))


def _pick_tiles(B, S, row_bytes, pe_row_bytes, sub, budget, *,
                max_seq_tile=None, fold_batch=None):
    """Choose (batch_block, seq_tile): largest sublane-aligned sequence tile
    whose double-buffered x/pe/out tiles fit the VMEM budget, folding the
    whole batch into the block when possible."""
    s_cap = S if max_seq_tile is None else max(1, min(S, int(max_seq_tile)))

    def best_ts(tb):
        per_row = 2 * tb * row_bytes + 2 * pe_row_bytes    # double-buffered
        cap = min(s_cap, budget // max(1, per_row))
        if cap >= S:
            return S                                       # full dim: exempt
        for m in (sub, 8):
            aligned = (cap // m) * m
            if aligned >= m:
                return aligned
        return None

    candidates = [B, 1] if fold_batch is None else ([B] if fold_batch else [1])
    for tb in candidates:
        ts = best_ts(tb)
        if ts is not None:
            return tb, ts
    # Last resort (extremely wide rows): smallest legal tile; the explicit
    # vmem_limit has headroom above the soft budget.
    return candidates[-1], min(S, 8)


# ---------------------------------------------------------------------------
# Wrapper
# ---------------------------------------------------------------------------
def positional_encoding_concat(x: jax.Array, d_model: int, *,
                               max_seq_tile=None,
                               fold_batch=None) -> jax.Array:
    """x: (B, S, Dx) -> concat([x, PE[:S] broadcast over batch], -1): (B, S, Dx+d_model)."""
    assert d_model % 2 == 0, "d_model must be even (matches PyTorch module)"
    B, S, Dx = x.shape
    Do = Dx + d_model
    dt = x.dtype
    itemsize = jnp.dtype(dt).itemsize

    pe = _pe_table(S, d_model, jnp.dtype(dt).name)         # (S, d_model)

    budget, vmem_limit = _vmem_budget_and_limit()
    sub = _sublane_multiple(itemsize)
    row_bytes = (Dx + Do) * itemsize                        # x-in + out, per row per batch elem
    pe_row_bytes = d_model * itemsize

    tb, ts = _pick_tiles(B, S, row_bytes, pe_row_bytes, sub, budget,
                         max_seq_tile=max_seq_tile, fold_batch=fold_batch)
    n_s = -(-S // ts)

    # Megacore: for large inputs that collapsed to a single grid step, split
    # the sequence so the 'parallel' axis spans both TensorCores (v7x).
    if (max_seq_tile is None and tb == B and n_s == 1 and S >= 2 * sub
            and B * S * row_bytes >= (2 << 20)):
        half = (S + 1) // 2
        ts2 = ((half + sub - 1) // sub) * sub
        if ts2 < S:
            ts = ts2
            n_s = -(-S // ts)

    kernel = _make_concat_kernel(Dx, d_model)

    if tb == B:
        # Batch folded into the block: one grid axis over sequence tiles.
        grid = (n_s,)
        in_specs = [pl.BlockSpec((B, ts, Dx), lambda s: (0, s, 0)),
                    pl.BlockSpec((ts, d_model), lambda s: (s, 0))]
        out_specs = pl.BlockSpec((B, ts, Do), lambda s: (0, s, 0))
        dims = ("parallel",)
    else:
        # Fallback for very large B*S*row: sequence outer, batch inner -> the
        # PE block index is constant across the inner axis, so it is DMA'd
        # once per s-tile and kept resident.
        grid = (n_s, B)
        in_specs = [pl.BlockSpec((1, ts, Dx), lambda s, b: (b, s, 0)),
                    pl.BlockSpec((ts, d_model), lambda s, b: (s, 0))]
        out_specs = pl.BlockSpec((1, ts, Do), lambda s, b: (b, s, 0))
        dims = ("parallel", "parallel")

    return pl.pallas_call(
        kernel,
        out_shape=jax.ShapeDtypeStruct((B, S, Do), dt),
        grid_spec=pltpu.PrefetchScalarGridSpec(
            num_scalar_prefetch=0,
            grid=grid,
            in_specs=in_specs,
            out_specs=out_specs),
        compiler_params=pltpu.CompilerParams(
            dimension_semantics=dims,
            vmem_limit_bytes=int(vmem_limit)),
        cost_estimate=pl.CostEstimate(
            flops=0, transcendentals=0,
            bytes_accessed=int(B * S * (Dx + Do) * itemsize
                               + S * d_model * itemsize)),
    )(x, pe)


# ---------------------------------------------------------------------------
# Pure-JAX reference replicating the PyTorch module.
# ---------------------------------------------------------------------------
def _reference(x: jax.Array, d_model: int) -> jax.Array:
    B, S, Dx = x.shape
    position = jnp.arange(S, dtype=jnp.float32)[:, None]
    div_term = jnp.exp(jnp.arange(0, d_model, 2, dtype=jnp.float32)
                       * (-math.log(10000.0) / d_model))
    pe = jnp.zeros((S, d_model), dtype=jnp.float32)
    pe = pe.at[:, 0::2].set(jnp.sin(position * div_term))
    pe = pe.at[:, 1::2].set(jnp.cos(position * div_term))
    pe_b = jnp.broadcast_to(pe[None], (B, S, d_model)).astype(x.dtype)
    return jnp.concatenate([x, pe_b], axis=2)


if __name__ == "__main__":
    k1, k2, k3, k4 = jax.random.split(jax.random.PRNGKey(0), 4)

    # Case 1: module-consistent small shapes (Dx=32 not lane-aligned -> fused concat store).
    B, S, Dx, D = 2, 8, 32, 32
    x1 = jax.random.normal(k1, (B, S, Dx), dtype=jnp.float32)
    out1 = jax.block_until_ready(positional_encoding_concat(x1, D))
    assert out1.shape == (B, S, Dx + D), out1.shape
    assert jnp.allclose(out1, _reference(x1, D), atol=1e-5, rtol=1e-5), "mismatch (case 1)"

    # Case 2: lane-aligned Dx and d_model -> two unmasked full-lane stores,
    # batch folded into the block (grid over sequence only).
    B2, S2, Dx2, D2 = 2, 16, 128, 128
    x2 = jax.random.normal(k2, (B2, S2, Dx2), dtype=jnp.float32)
    out2 = jax.block_until_ready(positional_encoding_concat(x2, D2))
    assert out2.shape == (B2, S2, Dx2 + D2), out2.shape
    assert jnp.allclose(out2, _reference(x2, D2), atol=1e-5, rtol=1e-5), "mismatch (case 2)"

    # Case 3: cdiv tiling with a masked partial last block (S=24, seq tile 16).
    B3, S3, Dx3, D3 = 2, 24, 128, 128
    x3 = jax.random.normal(k3, (B3, S3, Dx3), dtype=jnp.float32)
    out3 = jax.block_until_ready(positional_encoding_concat(x3, D3, max_seq_tile=16))
    assert out3.shape == (B3, S3, Dx3 + D3), out3.shape
    assert jnp.allclose(out3, _reference(x3, D3), atol=1e-5, rtol=1e-5), "mismatch (case 3)"

    # Case 4: batch-not-folded fallback (grid = (s_tiles, B), PE re-used across
    # the inner batch axis) with unaligned feature widths.
    B4, S4, Dx4, D4 = 3, 16, 32, 64
    x4 = jax.random.normal(k4, (B4, S4, Dx4), dtype=jnp.float32)
    out4 = jax.block_until_ready(positional_encoding_concat(x4, D4, fold_batch=False))
    assert out4.shape == (B4, S4, Dx4 + D4), out4.shape
    assert jnp.allclose(out4, _reference(x4, D4), atol=1e-5, rtol=1e-5), "mismatch (case 4)"

    print("KERNEL_OK")
</pallas_src>

<mosaic_0001>
module attributes {stable_mosaic.version = 11 : i64} {
  func.func @kernel(%arg0: i32, %arg1: memref<2x8x32xf32, #tpu.memory_space<vmem>>, %arg2: memref<8x32xf32, #tpu.memory_space<vmem>>, %arg3: memref<2x8x64xf32, #tpu.memory_space<vmem>>) attributes {dimension_semantics = [#tpu.dimension_semantics<parallel>], iteration_bounds = array<i64: 1>, scalar_prefetch = 0 : i64, scratch_operands = 0 : i64, tpu.core_type = #tpu.core_type<tc>, window_params = [{transform_indices = @transform_0, window_bounds = array<i64: 2, 8, 32>}, {transform_indices = @transform_1, window_bounds = array<i64: 8, 32>}, {transform_indices = @transform_2, window_bounds = array<i64: 2, 8, 64>}]} {
    %c0 = arith.constant 0 : index
    %c0_0 = arith.constant 0 : index
    %c0_1 = arith.constant 0 : index
    %0 = vector.load %arg1[%c0, %c0_0, %c0_1] : memref<2x8x32xf32, #tpu.memory_space<vmem>>, vector<2x8x32xf32>
    %c0_2 = arith.constant 0 : index
    %c0_3 = arith.constant 0 : index
    %1 = vector.load %arg2[%c0_2, %c0_3] : memref<8x32xf32, #tpu.memory_space<vmem>>, vector<8x32xf32>
    %2 = vector.shape_cast %1 : vector<8x32xf32> to vector<1x8x32xf32>
    %3 = vector.shape_cast %2 : vector<1x8x32xf32> to vector<1x8x32xf32>
    %4 = vector.broadcast %3 : vector<1x8x32xf32> to vector<2x8x32xf32>
    %5 = tpu.concatenate %0, %4 in 2 : vector<2x8x32xf32>, vector<2x8x32xf32> -> vector<2x8x64xf32>
    %c0_4 = arith.constant 0 : index
    %c0_5 = arith.constant 0 : index
    %c0_6 = arith.constant 0 : index
    %6 = vector.load %arg3[%c0_4, %c0_5, %c0_6] : memref<2x8x64xf32, #tpu.memory_space<vmem>>, vector<2x8x64xf32>
    tpu.vector_store %arg3[%c0_4, %c0_5, %c0_6], %5 {strides = array<i32>} : memref<2x8x64xf32, #tpu.memory_space<vmem>>, vector<2x8x64xf32>,
    return
  }
  func.func @transform_0(%arg0: i32) -> (i32, i32, i32) {
    %c0_i32 = arith.constant 0 : i32
    %c0_i32_0 = arith.constant 0 : i32
    %c0_i32_1 = arith.constant 0 : i32
    return %c0_i32, %arg0, %c0_i32_0 : i32, i32, i32
  }
  func.func @transform_1(%arg0: i32) -> (i32, i32) {
    %c0_i32 = arith.constant 0 : i32
    %c0_i32_0 = arith.constant 0 : i32
    return %arg0, %c0_i32 : i32, i32
  }
  func.func @transform_2(%arg0: i32) -> (i32, i32, i32) {
    %c0_i32 = arith.constant 0 : i32
    %c0_i32_0 = arith.constant 0 : i32
    %c0_i32_1 = arith.constant 0 : i32
    return %c0_i32, %arg0, %c0_i32_0 : i32, i32, i32
  }
}

</mosaic_0001>

<llo_original>
// kernel: tpu_custom_call.1
$region0: #{tpu_custom_call.1}
  #allocation0 [shape = 'u32[]', space=smem, size = 0x4, offset = 0x4, fixed_abs, tag = 'smem constant byte address 0x4 - core index']
  #allocation1 [shape = 'u32[144,128]{1,0:T(1,128)}', space=vmem, size = 0x12000, scoped, tag = 'internal scratch']
  %s0 = inlined_call_operand.hbm [shape: f32[2,8,32], index: 0, kind: input, shape index: {}]
  %s1 = inlined_call_operand.hbm [shape: f32[8,32], index: 1, kind: input, shape index: {}]
  %s2 = inlined_call_operand.hbm [shape: f32[2,8,64], index: 2, kind: output, shape index: {}]
  %s3 = sld [smem:[#allocation0]]
  $region26: #{tpu_custom_call.1} parent=0
    _
  %s5 = ssub.s32 1, %s3
  %s6 = scalar_select 0, %s5, %s3
  $region1: #{tpu_custom_call.1} parent=0
    #allocation2 [shape = 'u8[8192]{0}', space=vmem, size = 0x2000, scoped, tag = 'input window, operand 0, single buffered']
    #allocation3 [shape = 's32[1]{0}', space=sflag, size = 0x4, scoped, tag = 'scoped memory for tpu_custom_call.1']
    #allocation4 [shape = 's32[1]{0}', space=sflag, size = 0x4, scoped, tag = 'scoped memory for tpu_custom_call.1']
    #allocation5 [shape = 'u8[4096]{0}', space=vmem, size = 0x1000, scoped, tag = 'input window, operand 1, single buffered']
    #allocation6 [shape = 's32[1]{0}', space=sflag, size = 0x4, scoped, tag = 'scoped memory for tpu_custom_call.1']
    #allocation7 [shape = 'u8[8192]{0}', space=vmem, size = 0x2000, scoped, tag = 'output window, operand 0, single buffered']
    %7 = vsyncpa [#allocation3], 0
    %8 = vsyncpa [#allocation6], 0
    %9 = vsyncpa [#allocation4], 0
    // Predicated region
    $region2: #{tpu_custom_call.1} parent=1 // pred_check
      _
    $region3: #{tpu_custom_call.1} parent=1 // pred_check_branch
      %11 = sbr.rel (0) target = $region5
    $region4: #{tpu_custom_call.1} parent=1 // pred_region
      %s13 = ssub.s32 256, 256
      %14 = vsyncadd [#allocation3], %s13
      %s15 = sshll.u32 [#allocation2], 4
      %s16 = int_to_ptr.vmem [resolvable:$true] %s15
      %21 = dma.hbm_to_vmem [thread:$0]  %s0, 256, %s16, [#allocation3], 128, 128, 8
    $region5: #{tpu_custom_call.1} parent=1 // pred_fallthru
      _
    // Predicated region
    $region6: #{tpu_custom_call.1} parent=1 // pred_check
      _
    $region7: #{tpu_custom_call.1} parent=1 // pred_check_branch
      %23 = sbr.rel (0) target = $region9
    $region8: #{tpu_custom_call.1} parent=1 // pred_region
      %s25 = ssub.s32 128, 128
      %26 = vsyncadd [#allocation6], %s25
      %s28 = sshll.u32 [#allocation5], 4
      %s29 = int_to_ptr.vmem [resolvable:$true] %s28
      %31 = dma.hbm_to_vmem [thread:$0]  %s1, 128, %s29, [#allocation6]
    $region9: #{tpu_custom_call.1} parent=1 // pred_fallthru
      _
    // Predicated region
    $region10: #{tpu_custom_call.1} parent=1 // pred_check
      _
    $region11: #{tpu_custom_call.1} parent=1 // pred_check_branch
      %33 = sbr.rel (0) target = $region13
    $region12: #{tpu_custom_call.1} parent=1 // pred_region
      %34 = dma.done [#allocation3], 256
    $region13: #{tpu_custom_call.1} parent=1 // pred_fallthru
      _
    // Predicated region
    $region14: #{tpu_custom_call.1} parent=1 // pred_check
      _
    $region15: #{tpu_custom_call.1} parent=1 // pred_check_branch
      %36 = sbr.rel (0) target = $region17
    $region16: #{tpu_custom_call.1} parent=1 // pred_region
      %37 = dma.done [#allocation6], 128
    $region17: #{tpu_custom_call.1} parent=1 // pred_fallthru
      _
    %v38 = vld [vmem:[#allocation2] sm:$0xff]
    %v39 = vld [vmem:[#allocation2 + $0x8] sm:$0xff]
    %v40 = vld [vmem:[#allocation5] sm:$0xff]
    %42 = vrot.lane.b32.xlu0 %v40, 32
    %v43 = vpop.permute.xlu0 %42
    %vm45 = vcmask 261120
    %v46 = vsel %vm45, %v38, %v43
    %v47 = vsel %vm45, %v39, %v43
    %vm48 = vcmask 523264
    %49 = vst.msk [vmem:[#allocation7] sm:$0xff] %vm48, %v46
    %50 = vst.msk [vmem:[#allocation7 + $0x8] sm:$0xff] %vm48, %v47
    // Predicated region
    $region18: #{tpu_custom_call.1} parent=1 // pred_check
      _
    $region19: #{tpu_custom_call.1} parent=1 // pred_check_branch
      %52 = sbr.rel (0) target = $region21
    $region20: #{tpu_custom_call.1} parent=1 // pred_region
      %s54 = ssub.s32 256, 256
      %55 = vsyncadd [#allocation4], %s54
      %s56 = sshll.u32 [#allocation7], 4
      %s57 = int_to_ptr.vmem [resolvable:$true] %s56
      %62 = dma.vmem_to_hbm [thread:$0]  %s57, 256, %s2, [#allocation4], 128, 128, 8
    $region21: #{tpu_custom_call.1} parent=1 // pred_fallthru
      _
    // Predicated region
    $region22: #{tpu_custom_call.1} parent=1 // pred_check
      _
    $region23: #{tpu_custom_call.1} parent=1 // pred_check_branch
      %64 = sbr.rel (0) target = $region25
    $region24: #{tpu_custom_call.1} parent=1 // pred_region
      %65 = dma.done [#allocation4], 256
    $region25: #{tpu_custom_call.1} parent=1 // pred_fallthru
      _
    %66 = vsyncpa [#allocation3], 1
    %67 = vsyncpa [#allocation6], 1
    %68 = vsyncpa [#allocation4], 1

</llo_original>
